<compile_context>
chip_gen: v5e
topology: v5e:2x2
jax: 0.10.0
libtpu: 0.0.40
codegen_flags: <defaults>
</compile_context>

<pallas_src>
import functools

import jax
import jax.numpy as jnp
import numpy as np
from jax.experimental import pallas as pl
from jax.experimental.pallas import tpu as pltpu

LANE = 128  # per-height-tap lane-block padding (vreg lane width)


# ----------------------------------------------------------------------------
# Kernel: everything is MXU work on lane-aligned slabs; no relayout, one store.
# ----------------------------------------------------------------------------
def _make_fused_kernel(K1, K2, neg_slope):
    def kernel(x_ref, a_ref, b_ref, g1_ref, g2_ref, o_ref):
        # stage 1: conv1 width taps + input-channel contraction -> ONE matmul.
        #   x: (N*H0, W0*C0)   a: (W0*C0, K1*LANE)   s2d: (N*H0, K1*LANE)
        s2d = jnp.dot(x_ref[...], a_ref[...], preferred_element_type=jnp.float32)

        # stage 2: conv1 height taps via per-tap 0/1 shift matmuls (128-aligned
        # lane slices, accumulate in place -> no sublane concats).
        y2d = jnp.dot(g1_ref[0], s2d[:, :LANE], preferred_element_type=jnp.float32)
        for k in range(1, K1):
            y2d = y2d + jnp.dot(g1_ref[k], s2d[:, k * LANE:(k + 1) * LANE],
                                preferred_element_type=jnp.float32)

        # stage 3: fused leaky-relu (exact identity when slope == 1).
        if neg_slope != 1.0:
            y2d = jnp.where(y2d > 0.0, y2d, y2d * neg_slope)

        # stage 4: conv2 stride-2 width upsample + channel contraction -> ONE matmul.
        #   y2d: (N*H1, LANE)   b: (LANE, K2*LANE)   t2d: (N*H1, K2*LANE)
        t2d = jnp.dot(y2d, b_ref[...], preferred_element_type=jnp.float32)

        # stage 5: conv2 stride-2 height scatter via per-tap 0/1 shift matmuls.
        out = jnp.dot(g2_ref[0], t2d[:, :LANE], preferred_element_type=jnp.float32)
        for k in range(1, K2):
            out = out + jnp.dot(g2_ref[k], t2d[:, k * LANE:(k + 1) * LANE],
                                preferred_element_type=jnp.float32)

        # stage 6: single lane-dense full-block store (no masked sub-tile writes).
        o_ref[...] = out.astype(o_ref.dtype)

    return kernel


# ----------------------------------------------------------------------------
# Wrapper-side constant matrices (tiny, built once at trace time / via XLA).
# ----------------------------------------------------------------------------
def _conv1_band(wt1, W0, W1):
    # wt1: (C0, C1, K1, K1) PyTorch ConvTranspose2d weight (f32).
    # A[w0*C0+ci, kh*LANE + w1*C1 + co] = wt1[ci, co, kh, w1-w0]  (0 <= w1-w0 < K1)
    C0, C1, K1, _ = wt1.shape
    sel = np.zeros((W0, K1, W1), np.float32)
    for w in range(W0):
        for k in range(K1):
            sel[w, k, w + k] = 1.0
    a = jnp.einsum('uqv,copq->ucpvo', jnp.asarray(sel), wt1)   # (W0, C0, K1, W1, C1)
    a = a.reshape(W0 * C0, K1, W1 * C1)
    a = jnp.pad(a, ((0, 0), (0, 0), (0, LANE - W1 * C1)))      # pad tap block -> 128 lanes
    return a.reshape(W0 * C0, K1 * LANE)


def _conv2_band(wt2, W1, W2, stride):
    # wt2: (C1, C2, K2, K2).  Stride-2 width upsampling is baked in.
    # B[w1*C1+ci, kh*LANE + co*W2 + w2] = wt2[ci, co, kh, w2-stride*w1]
    C1, C2, K2, _ = wt2.shape
    sel = np.zeros((W1, K2, W2), np.float32)
    for w in range(W1):
        for k in range(K2):
            sel[w, k, stride * w + k] = 1.0
    b = jnp.einsum('uqv,copq->ucpov', jnp.asarray(sel), wt2)   # (W1, C1, K2, C2, W2)
    b = b.reshape(W1 * C1, K2, C2 * W2)
    b = jnp.pad(b, ((0, LANE - W1 * C1), (0, 0), (0, LANE - C2 * W2)))
    return b.reshape(LANE, K2 * LANE)


def _height_shift_taps(N, Hin, Hout, K, stride):
    # g[k, n*Hout + stride*hi + k, n*Hin + hi] = 1   (per-tap shift/scatter matrices)
    g = np.zeros((K, N * Hout, N * Hin), np.float32)
    for k in range(K):
        for n in range(N):
            for hi in range(Hin):
                g[k, n * Hout + stride * hi + k, n * Hin + hi] = 1.0
    return jnp.asarray(g)


# ----------------------------------------------------------------------------
# Forward pass
# ----------------------------------------------------------------------------
@functools.partial(jax.jit, static_argnums=(3,))
def model_forward(input0, w1, w2, negative_slope):
    # input0: (N, W0, H0, 64); y0 = input0.transpose(-1,-3) is NCHW (N, 64, H0, W0).
    N, W0, H0, C0 = input0.shape
    _, C1, K1, _ = w1.shape
    _, C2, K2, _ = w2.shape
    S2 = 2
    H1, W1 = H0 + K1 - 1, W0 + K1 - 1                 # conv1 output spatial
    H2, W2 = S2 * (H1 - 1) + K2, S2 * (W1 - 1) + K2   # conv2 output spatial
    assert W1 * C1 <= LANE and C2 * W2 <= LANE

    # Keep everything f32 (numerics; no bf16 "MXU feeding" at these sizes).
    w1f = w1.astype(jnp.float32)
    w2f = w2.astype(jnp.float32)

    # Stage-0 relayout done once in XLA on the ~15 KB input: rows=(n,h), lanes=(w,cin).
    x2d = input0.astype(jnp.float32).transpose(0, 2, 1, 3).reshape(N * H0, W0 * C0)

    a = _conv1_band(w1f, W0, W1)                      # (W0*C0, K1*128)
    b = _conv2_band(w2f, W1, W2, S2)                  # (128,   K2*128)
    g1 = _height_shift_taps(N, H0, H1, K1, 1)         # (K1, N*H1, N*H0)
    g2 = _height_shift_taps(N, H1, H2, K2, S2)        # (K2, N*H2, N*H1)

    kernel = _make_fused_kernel(K1, K2, float(negative_slope))

    # NOTE: grid=() on purpose at this toy size; add a batch/row grid with
    # dimension_semantics=("parallel",) only when N*H grows enough to amortize
    # the per-step overhead (and to use v7x's second TensorCore).
    vmem_spec = pl.BlockSpec(memory_space=pltpu.MemorySpace.VMEM)
    out2d = pl.pallas_call(
        kernel,
        out_shape=jax.ShapeDtypeStruct((N * H2, LANE), jnp.float32),
        in_specs=[vmem_spec] * 5,
        out_specs=vmem_spec,
        compiler_params=pltpu.CompilerParams(vmem_limit_bytes=16 * 1024 * 1024),
    )(x2d, a, b, g1, g2)

    # Lane-dense kernel output -> NCHW in XLA (a ~13 KB transpose, free).
    out = out2d[:, :C2 * W2].reshape(N, H2, C2, W2).transpose(0, 2, 1, 3)
    return out.astype(input0.dtype)


# ---------------- pure-JAX reference (for correctness check) ----------------
def _ref_conv_transpose_nchw(x, w, stride, K):
    w_tf = jnp.transpose(w[:, :, ::-1, ::-1], (1, 0, 2, 3))   # (Cout, Cin, K, K)
    return jax.lax.conv_general_dilated(
        x, w_tf, window_strides=(1, 1),
        padding=[(K - 1, K - 1)] * 2,
        lhs_dilation=(stride, stride),
        dimension_numbers=('NCHW', 'OIHW', 'NCHW'))


def reference_forward(input0, w1, w2, negative_slope):
    y0 = jnp.transpose(input0, (0, 3, 2, 1))
    y1 = _ref_conv_transpose_nchw(y0, w1, 1, 2)
    y4 = jnp.where(y1 > 0.0, y1, y1 * negative_slope)
    return _ref_conv_transpose_nchw(y4, w2, 2, 3)


if __name__ == "__main__":
    negative_slope = 1

    key = jax.random.PRNGKey(0)
    k_in, k_w1, k_w2 = jax.random.split(key, 3)

    # Small shapes consistent with the module: after transpose(-1,-3) the channel
    # count must equal 64 (conv_t in_channels), so input0's last dim is 64.
    input0 = jax.random.normal(k_in, (2, 6, 5, 64), dtype=jnp.float32)

    # PyTorch ConvTranspose2d weight layout: (Cin, Cout, K, K)
    w1 = jax.random.normal(k_w1, (64, 16, 2, 2), dtype=jnp.float32) * 0.05
    w2 = jax.random.normal(k_w2, (16, 3, 3, 3), dtype=jnp.float32) * 0.10

    out = jax.block_until_ready(model_forward(input0, w1, w2, negative_slope))
    ref = jax.block_until_ready(reference_forward(input0, w1, w2, negative_slope))

    assert out.shape == (2, 3, 13, 15), out.shape
    np.testing.assert_allclose(np.asarray(out), np.asarray(ref), rtol=1e-4, atol=1e-4)

    print("KERNEL_OK")
</pallas_src>

<mosaic_0001>
module attributes {stable_mosaic.version = 11 : i64} {
  func.func @kernel(%arg0: memref<10x384xf32, #tpu.memory_space<vmem>>, %arg1: memref<384x256xf32, #tpu.memory_space<vmem>>, %arg2: memref<128x384xf32, #tpu.memory_space<vmem>>, %arg3: memref<2x12x10xf32, #tpu.memory_space<vmem>>, %arg4: memref<3x26x12xf32, #tpu.memory_space<vmem>>, %arg5: memref<26x128xf32, #tpu.memory_space<vmem>>) attributes {dimension_semantics = [], scalar_prefetch = 0 : i64, scratch_operands = 0 : i64, tpu.core_type = #tpu.core_type<tc>} {
    %c0 = arith.constant 0 : index
    %c0_0 = arith.constant 0 : index
    %0 = vector.load %arg0[%c0, %c0_0] : memref<10x384xf32, #tpu.memory_space<vmem>>, vector<10x384xf32>
    %c0_1 = arith.constant 0 : index
    %c0_2 = arith.constant 0 : index
    %1 = vector.load %arg1[%c0_1, %c0_2] : memref<384x256xf32, #tpu.memory_space<vmem>>, vector<384x256xf32>
    %cst = arith.constant dense<0.000000e+00> : vector<10x256xf32>
    %2 = tpu.matmul %0, %1, %cst {dimension_numbers = #tpu.dot_dimension_numbers<[1], [0], [0], [1], [0, 0, 1, 1], [], []>} : vector<10x384xf32>, vector<384x256xf32>, vector<10x256xf32> -> vector<10x256xf32>
    %c0_3 = arith.constant 0 : index
    %c0_4 = arith.constant 0 : index
    %c0_5 = arith.constant 0 : index
    %3 = vector.load %arg3[%c0_3, %c0_4, %c0_5] : memref<2x12x10xf32, #tpu.memory_space<vmem>>, vector<1x12x10xf32>
    %4 = vector.shape_cast %3 : vector<1x12x10xf32> to vector<12x10xf32>
    %5 = vector.extract_strided_slice %2 {offsets = [0, 0], sizes = [10, 128], strides = [1, 1]} : vector<10x256xf32> to vector<10x128xf32>
    %cst_6 = arith.constant dense<0.000000e+00> : vector<12x128xf32>
    %6 = tpu.matmul %4, %5, %cst_6 {dimension_numbers = #tpu.dot_dimension_numbers<[1], [0], [0], [1], [0, 0, 1, 1], [], []>} : vector<12x10xf32>, vector<10x128xf32>, vector<12x128xf32> -> vector<12x128xf32>
    %c1 = arith.constant 1 : index
    %c0_7 = arith.constant 0 : index
    %c0_8 = arith.constant 0 : index
    %7 = vector.load %arg3[%c1, %c0_7, %c0_8] : memref<2x12x10xf32, #tpu.memory_space<vmem>>, vector<1x12x10xf32>
    %8 = vector.shape_cast %7 : vector<1x12x10xf32> to vector<12x10xf32>
    %9 = vector.extract_strided_slice %2 {offsets = [0, 128], sizes = [10, 128], strides = [1, 1]} : vector<10x256xf32> to vector<10x128xf32>
    %cst_9 = arith.constant dense<0.000000e+00> : vector<12x128xf32>
    %10 = tpu.matmul %8, %9, %cst_9 {dimension_numbers = #tpu.dot_dimension_numbers<[1], [0], [0], [1], [0, 0, 1, 1], [], []>} : vector<12x10xf32>, vector<10x128xf32>, vector<12x128xf32> -> vector<12x128xf32>
    %11 = arith.addf %6, %10 : vector<12x128xf32>
    %c0_10 = arith.constant 0 : index
    %c0_11 = arith.constant 0 : index
    %12 = vector.load %arg2[%c0_10, %c0_11] : memref<128x384xf32, #tpu.memory_space<vmem>>, vector<128x384xf32>
    %cst_12 = arith.constant dense<0.000000e+00> : vector<12x384xf32>
    %13 = tpu.matmul %11, %12, %cst_12 {dimension_numbers = #tpu.dot_dimension_numbers<[1], [0], [0], [1], [0, 0, 1, 1], [], []>} : vector<12x128xf32>, vector<128x384xf32>, vector<12x384xf32> -> vector<12x384xf32>
    %c0_13 = arith.constant 0 : index
    %c0_14 = arith.constant 0 : index
    %c0_15 = arith.constant 0 : index
    %14 = vector.load %arg4[%c0_13, %c0_14, %c0_15] : memref<3x26x12xf32, #tpu.memory_space<vmem>>, vector<1x26x12xf32>
    %15 = vector.shape_cast %14 : vector<1x26x12xf32> to vector<26x12xf32>
    %16 = vector.extract_strided_slice %13 {offsets = [0, 0], sizes = [12, 128], strides = [1, 1]} : vector<12x384xf32> to vector<12x128xf32>
    %cst_16 = arith.constant dense<0.000000e+00> : vector<26x128xf32>
    %17 = tpu.matmul %15, %16, %cst_16 {dimension_numbers = #tpu.dot_dimension_numbers<[1], [0], [0], [1], [0, 0, 1, 1], [], []>} : vector<26x12xf32>, vector<12x128xf32>, vector<26x128xf32> -> vector<26x128xf32>
    %c1_17 = arith.constant 1 : index
    %c0_18 = arith.constant 0 : index
    %c0_19 = arith.constant 0 : index
    %18 = vector.load %arg4[%c1_17, %c0_18, %c0_19] : memref<3x26x12xf32, #tpu.memory_space<vmem>>, vector<1x26x12xf32>
    %19 = vector.shape_cast %18 : vector<1x26x12xf32> to vector<26x12xf32>
    %20 = vector.extract_strided_slice %13 {offsets = [0, 128], sizes = [12, 128], strides = [1, 1]} : vector<12x384xf32> to vector<12x128xf32>
    %cst_20 = arith.constant dense<0.000000e+00> : vector<26x128xf32>
    %21 = tpu.matmul %19, %20, %cst_20 {dimension_numbers = #tpu.dot_dimension_numbers<[1], [0], [0], [1], [0, 0, 1, 1], [], []>} : vector<26x12xf32>, vector<12x128xf32>, vector<26x128xf32> -> vector<26x128xf32>
    %22 = arith.addf %17, %21 : vector<26x128xf32>
    %c2 = arith.constant 2 : index
    %c0_21 = arith.constant 0 : index
    %c0_22 = arith.constant 0 : index
    %23 = vector.load %arg4[%c2, %c0_21, %c0_22] : memref<3x26x12xf32, #tpu.memory_space<vmem>>, vector<1x26x12xf32>
    %24 = vector.shape_cast %23 : vector<1x26x12xf32> to vector<26x12xf32>
    %25 = vector.extract_strided_slice %13 {offsets = [0, 256], sizes = [12, 128], strides = [1, 1]} : vector<12x384xf32> to vector<12x128xf32>
    %cst_23 = arith.constant dense<0.000000e+00> : vector<26x128xf32>
    %26 = tpu.matmul %24, %25, %cst_23 {dimension_numbers = #tpu.dot_dimension_numbers<[1], [0], [0], [1], [0, 0, 1, 1], [], []>} : vector<26x12xf32>, vector<12x128xf32>, vector<26x128xf32> -> vector<26x128xf32>
    %27 = arith.addf %22, %26 : vector<26x128xf32>
    %c0_24 = arith.constant 0 : index
    %c0_25 = arith.constant 0 : index
    %28 = vector.load %arg5[%c0_24, %c0_25] : memref<26x128xf32, #tpu.memory_space<vmem>>, vector<26x128xf32>
    tpu.vector_store %arg5[%c0_24, %c0_25], %27 {strides = array<i32>} : memref<26x128xf32, #tpu.memory_space<vmem>>, vector<26x128xf32>,
    return
  }
}

</mosaic_0001>

<llo_original>
// kernel: model_forward.1
$region0: #{model_forward.1}
  #allocation0 [shape = 'u32[]', space=smem, size = 0x4, offset = 0x4, fixed_abs, tag = 'smem constant byte address 0x4 - core index']
  #allocation1 [shape = 'u32[72,128]{1,0:T(1,128)}', space=vmem, size = 0x9000, scoped, tag = 'internal scratch']
  %s0 = inlined_call_operand.vmem [shape: f32[10,384], index: 0, kind: input, shape index: {}]
  %s1 = inlined_call_operand.vmem [shape: f32[384,256], index: 1, kind: input, shape index: {}]
  %s2 = inlined_call_operand.vmem [shape: f32[128,384], index: 2, kind: input, shape index: {}]
  %s3 = inlined_call_operand.vmem [shape: f32[2,12,10], index: 3, kind: input, shape index: {}]
  %s4 = inlined_call_operand.vmem [shape: f32[3,26,12], index: 4, kind: input, shape index: {}]
  %s5 = inlined_call_operand.vmem [shape: f32[26,128], index: 5, kind: output, shape index: {}]
  %s6 = sld [smem:[#allocation0]]
  $region30: #{model_forward.1} parent=0
    _
  %s8 = ssub.s32 1, %s6
  %s9 = scalar_select 0, %s8, %s6
  // Predicated region
  $region2: #{model_forward.1} parent=0 // pred_check
    _
  $region3: #{model_forward.1} parent=0 // pred_check_branch
    %11 = sbr.rel (0) target = $region5
  $region4: #{model_forward.1} parent=0 // pred_region
    _
  $region5: #{model_forward.1} parent=0 // pred_fallthru
    _
  // Predicated region
  $region6: #{model_forward.1} parent=0 // pred_check
    _
  $region7: #{model_forward.1} parent=0 // pred_check_branch
    %13 = sbr.rel (0) target = $region9
  $region8: #{model_forward.1} parent=0 // pred_region
    _
  $region9: #{model_forward.1} parent=0 // pred_fallthru
    _
  // Predicated region
  $region10: #{model_forward.1} parent=0 // pred_check
    _
  $region11: #{model_forward.1} parent=0 // pred_check_branch
    %15 = sbr.rel (0) target = $region13
  $region12: #{model_forward.1} parent=0 // pred_region
    _
  $region13: #{model_forward.1} parent=0 // pred_fallthru
    _
  // Predicated region
  $region14: #{model_forward.1} parent=0 // pred_check
    _
  $region15: #{model_forward.1} parent=0 // pred_check_branch
    %17 = sbr.rel (0) target = $region17
  $region16: #{model_forward.1} parent=0 // pred_region
    _
  $region17: #{model_forward.1} parent=0 // pred_fallthru
    _
  // Predicated region
  $region18: #{model_forward.1} parent=0 // pred_check
    _
  $region19: #{model_forward.1} parent=0 // pred_check_branch
    %19 = sbr.rel (0) target = $region21
  $region20: #{model_forward.1} parent=0 // pred_region
    _
  $region21: #{model_forward.1} parent=0 // pred_fallthru
    _
  %v20 = vld [vmem:[%s0] sm:$0xff]
  %v21 = vld [vmem:[%s0 + $0x8] sm:$0xff]
  %v22 = vld [vmem:[%s0 + $0x10] sm:$0xff]
  %v23 = vld [vmem:[%s0 + $0x18] sm:$0x3]
  %v24 = vld [vmem:[%s0 + $0x20] sm:$0x3]
  %v25 = vld [vmem:[%s0 + $0x28] sm:$0x3]
  %v26 = vld [vmem:[%s1] sm:$0xff]
  %v27 = vld [vmem:[%s1 + $0x8] sm:$0xff]
  %v28 = vld [vmem:[%s1 + $0x10] sm:$0xff]
  %v29 = vld [vmem:[%s1 + $0x18] sm:$0xff]
  %v30 = vld [vmem:[%s1 + $0x20] sm:$0xff]
  %v31 = vld [vmem:[%s1 + $0x28] sm:$0xff]
  %v32 = vld [vmem:[%s1 + $0x30] sm:$0xff]
  %v33 = vld [vmem:[%s1 + $0x38] sm:$0xff]
  %v34 = vld [vmem:[%s1 + $0x40] sm:$0xff]
  %v35 = vld [vmem:[%s1 + $0x48] sm:$0xff]
  %v36 = vld [vmem:[%s1 + $0x50] sm:$0xff]
  %v37 = vld [vmem:[%s1 + $0x58] sm:$0xff]
  %v38 = vld [vmem:[%s1 + $0x60] sm:$0xff]
  %v39 = vld [vmem:[%s1 + $0x68] sm:$0xff]
  %v40 = vld [vmem:[%s1 + $0x70] sm:$0xff]
  %v41 = vld [vmem:[%s1 + $0x78] sm:$0xff]
  %v42 = vld [vmem:[%s1 + $0x80] sm:$0xff]
  %v43 = vld [vmem:[%s1 + $0x88] sm:$0xff]
  %v44 = vld [vmem:[%s1 + $0x90] sm:$0xff]
  %v45 = vld [vmem:[%s1 + $0x98] sm:$0xff]
  %v46 = vld [vmem:[%s1 + $0xa0] sm:$0xff]
  %v47 = vld [vmem:[%s1 + $0xa8] sm:$0xff]
  %v48 = vld [vmem:[%s1 + $0xb0] sm:$0xff]
  %v49 = vld [vmem:[%s1 + $0xb8] sm:$0xff]
  %v50 = vld [vmem:[%s1 + $0xc0] sm:$0xff]
  %v51 = vld [vmem:[%s1 + $0xc8] sm:$0xff]
  %v52 = vld [vmem:[%s1 + $0xd0] sm:$0xff]
  %v53 = vld [vmem:[%s1 + $0xd8] sm:$0xff]
  %v54 = vld [vmem:[%s1 + $0xe0] sm:$0xff]
  %v55 = vld [vmem:[%s1 + $0xe8] sm:$0xff]
  %v56 = vld [vmem:[%s1 + $0xf0] sm:$0xff]
  %v57 = vld [vmem:[%s1 + $0xf8] sm:$0xff]
  %v58 = vld [vmem:[%s1 + $0x100] sm:$0xff]
  %v59 = vld [vmem:[%s1 + $0x108] sm:$0xff]
  %v60 = vld [vmem:[%s1 + $0x110] sm:$0xff]
  %v61 = vld [vmem:[%s1 + $0x118] sm:$0xff]
  %v62 = vld [vmem:[%s1 + $0x120] sm:$0xff]
  %v63 = vld [vmem:[%s1 + $0x128] sm:$0xff]
  %v64 = vld [vmem:[%s1 + $0x130] sm:$0xff]
  %v65 = vld [vmem:[%s1 + $0x138] sm:$0xff]
  %v66 = vld [vmem:[%s1 + $0x140] sm:$0xff]
  %v67 = vld [vmem:[%s1 + $0x148] sm:$0xff]
  %v68 = vld [vmem:[%s1 + $0x150] sm:$0xff]
  %v69 = vld [vmem:[%s1 + $0x158] sm:$0xff]
  %v70 = vld [vmem:[%s1 + $0x160] sm:$0xff]
  %v71 = vld [vmem:[%s1 + $0x168] sm:$0xff]
  %v72 = vld [vmem:[%s1 + $0x170] sm:$0xff]
  %v73 = vld [vmem:[%s1 + $0x178] sm:$0xff]
  %v74 = vld [vmem:[%s1 + $0x180] sm:$0xff]
  %v75 = vld [vmem:[%s1 + $0x188] sm:$0xff]
  %v76 = vld [vmem:[%s1 + $0x190] sm:$0xff]
  %v77 = vld [vmem:[%s1 + $0x198] sm:$0xff]
  %v78 = vld [vmem:[%s1 + $0x1a0] sm:$0xff]
  %v79 = vld [vmem:[%s1 + $0x1a8] sm:$0xff]
  %v80 = vld [vmem:[%s1 + $0x1b0] sm:$0xff]
  %v81 = vld [vmem:[%s1 + $0x1b8] sm:$0xff]
  %v82 = vld [vmem:[%s1 + $0x1c0] sm:$0xff]
  %v83 = vld [vmem:[%s1 + $0x1c8] sm:$0xff]
  %v84 = vld [vmem:[%s1 + $0x1d0] sm:$0xff]
  %v85 = vld [vmem:[%s1 + $0x1d8] sm:$0xff]
  %v86 = vld [vmem:[%s1 + $0x1e0] sm:$0xff]
  %v87 = vld [vmem:[%s1 + $0x1e8] sm:$0xff]
  %v88 = vld [vmem:[%s1 + $0x1f0] sm:$0xff]
  %v89 = vld [vmem:[%s1 + $0x1f8] sm:$0xff]
  %v90 = vld [vmem:[%s1 + $0x200] sm:$0xff]
  %v91 = vld [vmem:[%s1 + $0x208] sm:$0xff]
  %v92 = vld [vmem:[%s1 + $0x210] sm:$0xff]
  %v93 = vld [vmem:[%s1 + $0x218] sm:$0xff]
  %v94 = vld [vmem:[%s1 + $0x220] sm:$0xff]
  %v95 = vld [vmem:[%s1 + $0x228] sm:$0xff]
  %v96 = vld [vmem:[%s1 + $0x230] sm:$0xff]
  %v97 = vld [vmem:[%s1 + $0x238] sm:$0xff]
  %v98 = vld [vmem:[%s1 + $0x240] sm:$0xff]
  %v99 = vld [vmem:[%s1 + $0x248] sm:$0xff]
  %v100 = vld [vmem:[%s1 + $0x250] sm:$0xff]
  %v101 = vld [vmem:[%s1 + $0x258] sm:$0xff]
  %v102 = vld [vmem:[%s1 + $0x260] sm:$0xff]
  %v103 = vld [vmem:[%s1 + $0x268] sm:$0xff]
  %v104 = vld [vmem:[%s1 + $0x270] sm:$0xff]
  %v105 = vld [vmem:[%s1 + $0x278] sm:$0xff]
  %v106 = vld [vmem:[%s1 + $0x280] sm:$0xff]
  %v107 = vld [vmem:[%s1 + $0x288] sm:$0xff]
  %v108 = vld [vmem:[%s1 + $0x290] sm:$0xff]
  %v109 = vld [vmem:[%s1 + $0x298] sm:$0xff]
  %v110 = vld [vmem:[%s1 + $0x2a0] sm:$0xff]
  %v111 = vld [vmem:[%s1 + $0x2a8] sm:$0xff]
  %v112 = vld [vmem:[%s1 + $0x2b0] sm:$0xff]
  %v113 = vld [vmem:[%s1 + $0x2b8] sm:$0xff]
  %v114 = vld [vmem:[%s1 + $0x2c0] sm:$0xff]
  %v115 = vld [vmem:[%s1 + $0x2c8] sm:$0xff]
  %v116 = vld [vmem:[%s1 + $0x2d0] sm:$0xff]
  %v117 = vld [vmem:[%s1 + $0x2d8] sm:$0xff]
  %v118 = vld [vmem:[%s1 + $0x2e0] sm:$0xff]
  %v119 = vld [vmem:[%s1 + $0x2e8] sm:$0xff]
  %v120 = vld [vmem:[%s1 + $0x2f0] sm:$0xff]
  %v121 = vld [vmem:[%s1 + $0x2f8] sm:$0xff]
  %122 = vmatpush.msra.mxu0 %v56
  %123 = vmatpush.msra.mxu0 %v54
  %124 = vmatpush.msra.mxu0 %v52
  %125 = vmatpush.msra.mxu0 %v50
  %126 = vmatpush.msra.mxu0 %v48
  %127 = vmatpush.msra.mxu0 %v46
  %128 = vmatpush.msra.mxu0 %v44
  %129 = vmatpush.msra.mxu0 %v42
  %130 = vmatpush.msra.mxu0 %v40
  %131 = vmatpush.msra.mxu0 %v38
  %132 = vmatpush.msra.mxu0 %v36
  %133 = vmatpush.msra.mxu0 %v34
  %134 = vmatpush.msra.mxu0 %v32
  %135 = vmatpush.msra.mxu0 %v30
  %136 = vmatpush.msra.mxu0 %v28
  %137 = vmatpush.msra.mxu0 %v26
  %138 = vmatmul.f32.gmra.mxu0 %v20
  %v139 = vpop.f32.mrf.mxu0
  %v140 = vadd.f32 0.0, %v139
  %141 = vmatmul.f32.gmra.mxu0 %v23
  %v142 = vpop.f32.mrf.mxu0
  %v143 = vadd.f32 0.0, %v142
  %144 = vdwg.mxu0
  %145 = vmatpush.msra.mxu0 %v88
  %146 = vmatpush.msra.mxu0 %v86
  %147 = vmatpush.msra.mxu0 %v84
  %148 = vmatpush.msra.mxu0 %v82
  %149 = vmatpush.msra.mxu0 %v80
  %150 = vmatpush.msra.mxu0 %v78
  %151 = vmatpush.msra.mxu0 %v76
  %152 = vmatpush.msra.mxu0 %v74
  %153 = vmatpush.msra.mxu0 %v72
  %154 = vmatpush.msra.mxu0 %v70
  %155 = vmatpush.msra.mxu0 %v68
  %156 = vmatpush.msra.mxu0 %v66
  %157 = vmatpush.msra.mxu0 %v64
  %158 = vmatpush.msra.mxu0 %v62
  %159 = vmatpush.msra.mxu0 %v60
  %160 = vmatpush.msra.mxu0 %v58
  %161 = vmatmul.f32.gmra.mxu0 %v21
  %v162 = vpop.f32.mrf.mxu0
  %v163 = vadd.f32 %v140, %v162
  %164 = vmatmul.f32.gmra.mxu0 %v24
  %v165 = vpop.f32.mrf.mxu0
  %v166 = vadd.f32 %v143, %v165
  %167 = vdwg.mxu0
  %168 = vmatpush.msra.mxu0 %v120
  %169 = vmatpush.msra.mxu0 %v118
  %170 = vmatpush.msra.mxu0 %v116
  %171 = vmatpush.msra.mxu0 %v114
  %172 = vmatpush.msra.mxu0 %v112
  %173 = vmatpush.msra.mxu0 %v110
  %174 = vmatpush.msra.mxu0 %v108
  %175 = vmatpush.msra.mxu0 %v106
  %176 = vmatpush.msra.mxu0 %v104
  %177 = vmatpush.msra.mxu0 %v102
  %178 = vmatpush.msra.mxu0 %v100
  %179 = vmatpush.msra.mxu0 %v98
  %180 = vmatpush.msra.mxu0 %v96
  %181 = vmatpush.msra.mxu0 %v94
  %182 = vmatpush.msra.mxu0 %v92
  %183 = vmatpush.msra.mxu0 %v90
  %184 = vmatmul.f32.gmra.mxu0 %v22
  %v185 = vpop.f32.mrf.mxu0
  %v186 = vadd.f32 %v163, %v185
  %187 = vmatmul.f32.gmra.mxu0 %v25
  %v188 = vpop.f32.mrf.mxu0
  %v189 = vadd.f32 %v166, %v188
  %190 = vdwg.mxu0
  %191 = vmatpush.msra.mxu0 %v57
  %192 = vmatpush.msra.mxu0 %v55
  %193 = vmatpush.msra.mxu0 %v53
  %194 = vmatpush.msra.mxu0 %v51
  %195 = vmatpush.msra.mxu0 %v49
  %196 = vmatpush.msra.mxu0 %v47
  %197 = vmatpush.msra.mxu0 %v45
  %198 = vmatpush.msra.mxu0 %v43
  %199 = vmatpush.msra.mxu0 %v41
  %200 = vmatpush.msra.mxu0 %v39
  %201 = vmatpush.msra.mxu0 %v37
  %202 = vmatpush.msra.mxu0 %v35
  %203 = vmatpush.msra.mxu0 %v33
  %204 = vmatpush.msra.mxu0 %v31
  %205 = vmatpush.msra.mxu0 %v29
  %206 = vmatpush.msra.mxu0 %v27
  %207 = vmatmul.f32.gmra.mxu0 %v20
  %v208 = vpop.f32.mrf.mxu0
  %v209 = vadd.f32 0.0, %v208
  %210 = vmatmul.f32.gmra.mxu0 %v23
  %v211 = vpop.f32.mrf.mxu0
  %v212 = vadd.f32 0.0, %v211
  %213 = vdwg.mxu0
  %214 = vmatpush.msra.mxu0 %v89
  %215 = vmatpush.msra.mxu0 %v87
  %216 = vmatpush.msra.mxu0 %v85
  %217 = vmatpush.msra.mxu0 %v83
  %218 = vmatpush.msra.mxu0 %v81
  %219 = vmatpush.msra.mxu0 %v79
  %220 = vmatpush.msra.mxu0 %v77
  %221 = vmatpush.msra.mxu0 %v75
  %222 = vmatpush.msra.mxu0 %v73
  %223 = vmatpush.msra.mxu0 %v71
  %224 = vmatpush.msra.mxu0 %v69
  %225 = vmatpush.msra.mxu0 %v67
  %226 = vmatpush.msra.mxu0 %v65
  %227 = vmatpush.msra.mxu0 %v63
  %228 = vmatpush.msra.mxu0 %v61
  %229 = vmatpush.msra.mxu0 %v59
  %230 = vmatmul.f32.gmra.mxu0 %v21
  %v231 = vpop.f32.mrf.mxu0
  %v232 = vadd.f32 %v209, %v231
  %233 = vmatmul.f32.gmra.mxu0 %v24
  %v234 = vpop.f32.mrf.mxu0
  %v235 = vadd.f32 %v212, %v234
  %236 = vdwg.mxu0
  %237 = vmatpush.msra.mxu0 %v121
  %238 = vmatpush.msra.mxu0 %v119
  %239 = vmatpush.msra.mxu0 %v117
  %240 = vmatpush.msra.mxu0 %v115
  %241 = vmatpush.msra.mxu0 %v113
  %242 = vmatpush.msra.mxu0 %v111
  %243 = vmatpush.msra.mxu0 %v109
  %244 = vmatpush.msra.mxu0 %v107
  %245 = vmatpush.msra.mxu0 %v105
  %246 = vmatpush.msra.mxu0 %v103
  %247 = vmatpush.msra.mxu0 %v101
  %248 = vmatpush.msra.mxu0 %v99
  %249 = vmatpush.msra.mxu0 %v97
  %250 = vmatpush.msra.mxu0 %v95
  %251 = vmatpush.msra.mxu0 %v93
  %252 = vmatpush.msra.mxu0 %v91
  %253 = vmatmul.f32.gmra.mxu0 %v22
  %v254 = vpop.f32.mrf.mxu0
  %v255 = vadd.f32 %v232, %v254
  %256 = vmatmul.f32.gmra.mxu0 %v25
  %v257 = vpop.f32.mrf.mxu0
  %v258 = vadd.f32 %v235, %v257
  %259 = vdwg.mxu0
  %v260 = vld [vmem:[%s3] sm:$0xff]
  %v261 = vld [vmem:[%s3 + $0x8] sm:$0xf]
  %s262 = scalar_lea.vmem %s3, 16
  %v263 = vld [vmem:[%s262] sm:$0xff]
  %v264 = vld [vmem:[%s262 + $0x8] sm:$0xf]
  %vm265 = vcmask 80896
  %v267 = vsel %vm265, %v263, 0
  %v270 = vsel %vm265, %v264, 0
  %vm272 = vcmask 1041408
  %v274 = vsel %vm272, %v258, 0
  %276 = vmatpush.msra.mxu0 0.0
  %277 = vmatpush.msra.mxu0 0.0
  %278 = vmatpush.msra.mxu0 0.0
  %279 = vmatpush.msra.mxu0 0.0
  %280 = vmatpush.msra.mxu0 0.0
  %281 = vmatpush.msra.mxu0 0.0
  %282 = vmatpush.msra.mxu0 0.0
  %283 = vmatpush.msra.mxu0 0.0
  %284 = vmatpush.msra.mxu0 0.0
  %285 = vmatpush.msra.mxu0 0.0
  %286 = vmatpush.msra.mxu0 0.0
  %287 = vmatpush.msra.mxu0 0.0
  %288 = vmatpush.msra.mxu0 0.0
  %289 = vmatpush.msra.mxu0 0.0
  %290 = vmatpush.msra.mxu0 %v274
  %291 = vmatpush.msra.mxu0 %v255
  %292 = vmatmul.f32.gmra.mxu0 %v267
  %v293 = vpop.f32.mrf.mxu0
  %v294 = vadd.f32 0.0, %v293
  %295 = vmatmul.f32.gmra.mxu0 %v270
  %v296 = vpop.f32.mrf.mxu0
  %v297 = vadd.f32 0.0, %v296
  %298 = vdwg.mxu0
  %v300 = vsel %vm265, %v260, 0
  %v303 = vsel %vm265, %v261, 0
  %v306 = vsel %vm272, %v189, 0
  %308 = vmatpush.msra.mxu0 0.0
  %309 = vmatpush.msra.mxu0 0.0
  %310 = vmatpush.msra.mxu0 0.0
  %311 = vmatpush.msra.mxu0 0.0
  %312 = vmatpush.msra.mxu0 0.0
  %313 = vmatpush.msra.mxu0 0.0
  %314 = vmatpush.msra.mxu0 0.0
  %315 = vmatpush.msra.mxu0 0.0
  %316 = vmatpush.msra.mxu0 0.0
  %317 = vmatpush.msra.mxu0 0.0
  %318 = vmatpush.msra.mxu0 0.0
  %319 = vmatpush.msra.mxu0 0.0
  %320 = vmatpush.msra.mxu0 0.0
  %321 = vmatpush.msra.mxu0 0.0
  %322 = vmatpush.msra.mxu0 %v306
  %323 = vmatpush.msra.mxu0 %v186
  %324 = vmatmul.f32.gmra.mxu0 %v300
  %v325 = vpop.f32.mrf.mxu0
  %v326 = vadd.f32 %v294, %v325
  %327 = vmatmul.f32.gmra.mxu0 %v303
  %v328 = vpop.f32.mrf.mxu0
  %v329 = vadd.f32 %v297, %v328
  %330 = vdwg.mxu0
  %v331 = vld [vmem:[%s2] sm:$0xff]
  %v332 = vld [vmem:[%s2 + $0x8] sm:$0xff]
  %v333 = vld [vmem:[%s2 + $0x10] sm:$0xff]
  %v334 = vld [vmem:[%s2 + $0x18] sm:$0xff]
  %v335 = vld [vmem:[%s2 + $0x20] sm:$0xff]
  %v336 = vld [vmem:[%s2 + $0x28] sm:$0xff]
  %v337 = vld [vmem:[%s2 + $0x30] sm:$0xff]
  %v338 = vld [vmem:[%s2 + $0x38] sm:$0xff]
  %v339 = vld [vmem:[%s2 + $0x40] sm:$0xff]
  %v340 = vld [vmem:[%s2 + $0x48] sm:$0xff]
  %v341 = vld [vmem:[%s2 + $0x50] sm:$0xff]
  %v342 = vld [vmem:[%s2 + $0x58] sm:$0xff]
  %v343 = vld [vmem:[%s2 + $0x60] sm:$0xff]
  %v344 = vld [vmem:[%s2 + $0x68] sm:$0xff]
  %v345 = vld [vmem:[%s2 + $0x70] sm:$0xff]
  %v346 = vld [vmem:[%s2 + $0x78] sm:$0xff]
  %v347 = vld [vmem:[%s2 + $0x80] sm:$0xff]
  %v348 = vld [vmem:[%s2 + $0x88] sm:$0xff]
  %v349 = vld [vmem:[%s2 + $0x90] sm:$0xff]
  %v350 = vld [vmem:[%s2 + $0x98] sm:$0xff]
  %v351 = vld [vmem:[%s2 + $0xa0] sm:$0xff]
  %v352 = vld [vmem:[%s2 + $0xa8] sm:$0xff]
  %v353 = vld [vmem:[%s2 + $0xb0] sm:$0xff]
  %v354 = vld [vmem:[%s2 + $0xb8] sm:$0xff]
  %v355 = vld [vmem:[%s2 + $0xc0] sm:$0xff]
  %v356 = vld [vmem:[%s2 + $0xc8] sm:$0xff]
  %v357 = vld [vmem:[%s2 + $0xd0] sm:$0xff]
  %v358 = vld [vmem:[%s2 + $0xd8] sm:$0xff]
  %v359 = vld [vmem:[%s2 + $0xe0] sm:$0xff]
  %v360 = vld [vmem:[%s2 + $0xe8] sm:$0xff]
  %v361 = vld [vmem:[%s2 + $0xf0] sm:$0xff]
  %v362 = vld [vmem:[%s2 + $0xf8] sm:$0xff]
  %v363 = vld [vmem:[%s2 + $0x100] sm:$0xff]
  %v364 = vld [vmem:[%s2 + $0x108] sm:$0xff]
  %v365 = vld [vmem:[%s2 + $0x110] sm:$0xff]
  %v366 = vld [vmem:[%s2 + $0x118] sm:$0xff]
  %v367 = vld [vmem:[%s2 + $0x120] sm:$0xff]
  %v368 = vld [vmem:[%s2 + $0x128] sm:$0xff]
  %v369 = vld [vmem:[%s2 + $0x130] sm:$0xff]
  %v370 = vld [vmem:[%s2 + $0x138] sm:$0xff]
  %v371 = vld [vmem:[%s2 + $0x140] sm:$0xff]
  %v372 = vld [vmem:[%s2 + $0x148] sm:$0xff]
  %v373 = vld [vmem:[%s2 + $0x150] sm:$0xff]
  %v374 = vld [vmem:[%s2 + $0x158] sm:$0xff]
  %v375 = vld [vmem:[%s2 + $0x160] sm:$0xff]
  %v376 = vld [vmem:[%s2 + $0x168] sm:$0xff]
  %v377 = vld [vmem:[%s2 + $0x170] sm:$0xff]
  %v378 = vld [vmem:[%s2 + $0x178] sm:$0xff]
  %379 = vmatpush.msra.mxu0 %v376
  %380 = vmatpush.msra.mxu0 %v373
  %381 = vmatpush.msra.mxu0 %v370
  %382 = vmatpush.msra.mxu0 %v367
  %383 = vmatpush.msra.mxu0 %v364
  %384 = vmatpush.msra.mxu0 %v361
  %385 = vmatpush.msra.mxu0 %v358
  %386 = vmatpush.msra.mxu0 %v355
  %387 = vmatpush.msra.mxu0 %v352
  %388 = vmatpush.msra.mxu0 %v349
  %389 = vmatpush.msra.mxu0 %v346
  %390 = vmatpush.msra.mxu0 %v343
  %391 = vmatpush.msra.mxu0 %v340
  %392 = vmatpush.msra.mxu0 %v337
  %393 = vmatpush.msra.mxu0 %v334
  %394 = vmatpush.msra.mxu0 %v331
  %395 = vmatmul.f32.gmra.mxu0 %v326
  %v396 = vpop.f32.mrf.mxu0
  %v397 = vadd.f32 0.0, %v396
  %398 = vmatmul.f32.gmra.mxu0 %v329
  %v399 = vpop.f32.mrf.mxu0
  %v400 = vadd.f32 0.0, %v399
  %401 = vdwg.mxu0
  %402 = vmatpush.msra.mxu0 %v377
  %403 = vmatpush.msra.mxu0 %v374
  %404 = vmatpush.msra.mxu0 %v371
  %405 = vmatpush.msra.mxu0 %v368
  %406 = vmatpush.msra.mxu0 %v365
  %407 = vmatpush.msra.mxu0 %v362
  %408 = vmatpush.msra.mxu0 %v359
  %409 = vmatpush.msra.mxu0 %v356
  %410 = vmatpush.msra.mxu0 %v353
  %411 = vmatpush.msra.mxu0 %v350
  %412 = vmatpush.msra.mxu0 %v347
  %413 = vmatpush.msra.mxu0 %v344
  %414 = vmatpush.msra.mxu0 %v341
  %415 = vmatpush.msra.mxu0 %v338
  %416 = vmatpush.msra.mxu0 %v335
  %417 = vmatpush.msra.mxu0 %v332
  %418 = vmatmul.f32.gmra.mxu0 %v326
  %v419 = vpop.f32.mrf.mxu0
  %v420 = vadd.f32 0.0, %v419
  %421 = vmatmul.f32.gmra.mxu0 %v329
  %v422 = vpop.f32.mrf.mxu0
  %v423 = vadd.f32 0.0, %v422
  %424 = vdwg.mxu0
  %425 = vmatpush.msra.mxu0 %v378
  %426 = vmatpush.msra.mxu0 %v375
  %427 = vmatpush.msra.mxu0 %v372
  %428 = vmatpush.msra.mxu0 %v369
  %429 = vmatpush.msra.mxu0 %v366
  %430 = vmatpush.msra.mxu0 %v363
  %431 = vmatpush.msra.mxu0 %v360
  %432 = vmatpush.msra.mxu0 %v357
  %433 = vmatpush.msra.mxu0 %v354
  %434 = vmatpush.msra.mxu0 %v351
  %435 = vmatpush.msra.mxu0 %v348
  %436 = vmatpush.msra.mxu0 %v345
  %437 = vmatpush.msra.mxu0 %v342
  %438 = vmatpush.msra.mxu0 %v339
  %439 = vmatpush.msra.mxu0 %v336
  %440 = vmatpush.msra.mxu0 %v333
  %441 = vmatmul.f32.gmra.mxu0 %v326
  %v442 = vpop.f32.mrf.mxu0
  %v443 = vadd.f32 0.0, %v442
  %444 = vmatmul.f32.gmra.mxu0 %v329
  %v445 = vpop.f32.mrf.mxu0
  %v446 = vadd.f32 0.0, %v445
  %447 = vdwg.mxu0
  %v448 = vld [vmem:[%s4] sm:$0xff]
  %v449 = vld [vmem:[%s4 + $0x8] sm:$0xff]
  %v450 = vld [vmem:[%s4 + $0x10] sm:$0xff]
  %v451 = vld [vmem:[%s4 + $0x18] sm:$0x3]
  %s452 = scalar_lea.vmem %s4, 32
  %v453 = vld [vmem:[%s452] sm:$0xff]
  %v454 = vld [vmem:[%s452 + $0x8] sm:$0xff]
  %v455 = vld [vmem:[%s452 + $0x10] sm:$0xff]
  %v456 = vld [vmem:[%s452 + $0x18] sm:$0x3]
  %vm457 = vcmask 97280
  %v459 = vsel %vm457, %v453, 0
  %v462 = vsel %vm457, %v454, 0
  %v465 = vsel %vm457, %v455, 0
  %v468 = vsel %vm457, %v456, 0
  %vm470 = vcmask 1043456
  %v472 = vsel %vm470, %v423, 0
  %474 = vmatpush.msra.mxu0 0.0
  %475 = vmatpush.msra.mxu0 0.0
  %476 = vmatpush.msra.mxu0 0.0
  %477 = vmatpush.msra.mxu0 0.0
  %478 = vmatpush.msra.mxu0 0.0
  %479 = vmatpush.msra.mxu0 0.0
  %480 = vmatpush.msra.mxu0 0.0
  %481 = vmatpush.msra.mxu0 0.0
  %482 = vmatpush.msra.mxu0 0.0
  %483 = vmatpush.msra.mxu0 0.0
  %484 = vmatpush.msra.mxu0 0.0
  %485 = vmatpush.msra.mxu0 0.0
  %486 = vmatpush.msra.mxu0 0.0
  %487 = vmatpush.msra.mxu0 0.0
  %488 = vmatpush.msra.mxu0 %v472
  %489 = vmatpush.msra.mxu0 %v420
  %490 = vmatmul.f32.gmra.mxu0 %v459
  %v491 = vpop.f32.mrf.mxu0
  %v492 = vadd.f32 0.0, %v491
  %493 = vmatmul.f32.gmra.mxu0 %v462
  %v494 = vpop.f32.mrf.mxu0
  %v495 = vadd.f32 0.0, %v494
  %496 = vmatmul.f32.gmra.mxu0 %v465
  %v497 = vpop.f32.mrf.mxu0
  %v498 = vadd.f32 0.0, %v497
  %499 = vmatmul.f32.gmra.mxu0 %v468
  %v500 = vpop.f32.mrf.mxu0
  %v501 = vadd.f32 0.0, %v500
  %502 = vdwg.mxu0
  %v504 = vsel %vm457, %v448, 0
  %v507 = vsel %vm457, %v449, 0
  %v510 = vsel %vm457, %v450, 0
  %v513 = vsel %vm457, %v451, 0
  %v516 = vsel %vm470, %v400, 0
  %518 = vmatpush.msra.mxu0 0.0
  %519 = vmatpush.msra.mxu0 0.0
  %520 = vmatpush.msra.mxu0 0.0
  %521 = vmatpush.msra.mxu0 0.0
  %522 = vmatpush.msra.mxu0 0.0
  %523 = vmatpush.msra.mxu0 0.0
  %524 = vmatpush.msra.mxu0 0.0
  %525 = vmatpush.msra.mxu0 0.0
  %526 = vmatpush.msra.mxu0 0.0
  %527 = vmatpush.msra.mxu0 0.0
  %528 = vmatpush.msra.mxu0 0.0
  %529 = vmatpush.msra.mxu0 0.0
  %530 = vmatpush.msra.mxu0 0.0
  %531 = vmatpush.msra.mxu0 0.0
  %532 = vmatpush.msra.mxu0 %v516
  %533 = vmatpush.msra.mxu0 %v397
  %534 = vmatmul.f32.gmra.mxu0 %v504
  %v535 = vpop.f32.mrf.mxu0
  %v536 = vadd.f32 %v492, %v535
  %537 = vmatmul.f32.gmra.mxu0 %v507
  %v538 = vpop.f32.mrf.mxu0
  %v539 = vadd.f32 %v495, %v538
  %540 = vmatmul.f32.gmra.mxu0 %v510
  %v541 = vpop.f32.mrf.mxu0
  %v542 = vadd.f32 %v498, %v541
  %543 = vmatmul.f32.gmra.mxu0 %v513
  %v544 = vpop.f32.mrf.mxu0
  %v545 = vadd.f32 %v501, %v544
  %546 = vdwg.mxu0
  %s547 = scalar_lea.vmem %s4, 64
  %v548 = vld [vmem:[%s547] sm:$0xff]
  %v549 = vld [vmem:[%s547 + $0x8] sm:$0xff]
  %v550 = vld [vmem:[%s547 + $0x10] sm:$0xff]
  %v551 = vld [vmem:[%s547 + $0x18] sm:$0x3]
  %v553 = vsel %vm457, %v548, 0
  %v556 = vsel %vm457, %v549, 0
  %v559 = vsel %vm457, %v550, 0
  %v562 = vsel %vm457, %v551, 0
  %v565 = vsel %vm470, %v446, 0
  %567 = vmatpush.msra.mxu0 0.0
  %568 = vmatpush.msra.mxu0 0.0
  %569 = vmatpush.msra.mxu0 0.0
  %570 = vmatpush.msra.mxu0 0.0
  %571 = vmatpush.msra.mxu0 0.0
  %572 = vmatpush.msra.mxu0 0.0
  %573 = vmatpush.msra.mxu0 0.0
  %574 = vmatpush.msra.mxu0 0.0
  %575 = vmatpush.msra.mxu0 0.0
  %576 = vmatpush.msra.mxu0 0.0
  %577 = vmatpush.msra.mxu0 0.0
  %578 = vmatpush.msra.mxu0 0.0
  %579 = vmatpush.msra.mxu0 0.0
  %580 = vmatpush.msra.mxu0 0.0
  %581 = vmatpush.msra.mxu0 %v565
  %582 = vmatpush.msra.mxu0 %v443
  %583 = vmatmul.f32.gmra.mxu0 %v553
  %v584 = vpop.f32.mrf.mxu0
  %v585 = vadd.f32 0.0, %v584
  %586 = vmatmul.f32.gmra.mxu0 %v556
  %v587 = vpop.f32.mrf.mxu0
  %v588 = vadd.f32 0.0, %v587
  %589 = vmatmul.f32.gmra.mxu0 %v559
  %v590 = vpop.f32.mrf.mxu0
  %v591 = vadd.f32 0.0, %v590
  %592 = vmatmul.f32.gmra.mxu0 %v562
  %v593 = vpop.f32.mrf.mxu0
  %v594 = vadd.f32 0.0, %v593
  %595 = vdwg.mxu0
  %v596 = vadd.f32 %v536, %v585
  %v597 = vadd.f32 %v539, %v588
  %v598 = vadd.f32 %v542, %v591
  %v599 = vadd.f32 %v545, %v594
  %600 = vst [vmem:[%s5] sm:$0xff] %v596
  %601 = vst [vmem:[%s5 + $0x8] sm:$0xff] %v597
  %602 = vst [vmem:[%s5 + $0x10] sm:$0xff] %v598
  %603 = vst [vmem:[%s5 + $0x18] sm:$0x3] %v599
  // Predicated region
  $region22: #{model_forward.1} parent=0 // pred_check
    _
  $region23: #{model_forward.1} parent=0 // pred_check_branch
    %605 = sbr.rel (0) target = $region25
  $region24: #{model_forward.1} parent=0 // pred_region
    _
  $region25: #{model_forward.1} parent=0 // pred_fallthru
    _
  // Predicated region
  $region26: #{model_forward.1} parent=0 // pred_check
    _
  $region27: #{model_forward.1} parent=0 // pred_check_branch
    %607 = sbr.rel (0) target = $region29
  $region28: #{model_forward.1} parent=0 // pred_region
    _
  $region29: #{model_forward.1} parent=0 // pred_fallthru
    _

</llo_original>
